<compile_context>
chip_gen: v5e
topology: v5e:2x2
jax: 0.10.0
libtpu: 0.0.40
codegen_flags: <defaults>
</compile_context>

<pallas_src>
import functools

import jax
import jax.numpy as jnp
from jax import lax
from jax.experimental import pallas as pl
from jax.experimental.pallas import tpu as pltpu


def _mha_kernel(x_ref, wqkv_ref, wproj_ref, b_ref, out_ref, *, num_heads,
                head_size):
    """One batch element: fused QKV proj + causal attention (all heads) + proj.

    x_ref    : (1, T, C)
    wqkv_ref : (C, 3C)  columns [0:C)=Q, [C:2C)=K, [2C:3C)=V; inside each
                        C-wide section, column block h*hs:(h+1)*hs is head h.
    wproj_ref: (C, C)   x @ W layout
    b_ref    : (1, C)
    out_ref  : (1, T, C)
    """
    x = x_ref[0]                                                # (T, C)
    T, C = x.shape
    hs = head_size

    # One wide MXU pass produces every head's Q, K and V at once.
    qkv = jnp.dot(x, wqkv_ref[...],
                  preferred_element_type=jnp.float32)           # (T, 3C) f32

    # NOTE: the PyTorch module scales by C ** -0.5 (n_embd), NOT head_size.
    scale = jnp.float32(C) ** -0.5
    row = lax.broadcasted_iota(jnp.int32, (T, T), 0)
    col = lax.broadcasted_iota(jnp.int32, (T, T), 1)
    causal = col <= row                                         # lower-tri

    head_outs = []
    for h in range(num_heads):                                  # static unroll
        q = qkv[:, h * hs:(h + 1) * hs]                         # (T, hs)
        k = qkv[:, C + h * hs:C + (h + 1) * hs]                 # (T, hs)
        v = qkv[:, 2 * C + h * hs:2 * C + (h + 1) * hs]         # (T, hs)

        wei = jnp.dot(q, k.T, preferred_element_type=jnp.float32) * scale
        wei = jnp.where(causal, wei, -jnp.inf)
        # Explicit softmax: max-subtract, exp (EUP), reciprocal (EUP, approx).
        m = jnp.max(wei, axis=-1, keepdims=True)
        e = jnp.exp(wei - m)
        s = jnp.sum(e, axis=-1, keepdims=True)
        p = e * pl.reciprocal(s, approx=True)
        head_outs.append(
            jnp.dot(p, v, preferred_element_type=jnp.float32))  # (T, hs)

    # torch.cat([...], dim=-1): head h occupies columns h*hs:(h+1)*hs.
    cat = jnp.concatenate(head_outs, axis=-1)                   # (T, C)

    y = jnp.dot(cat.astype(wproj_ref.dtype), wproj_ref[...],
                preferred_element_type=jnp.float32)
    y = y + b_ref[...]                                          # (T,C)+(1,C)
    out_ref[0] = y.astype(out_ref.dtype)


@jax.jit
def multi_head_attention(x, wq, wk, wv, w_proj, b_proj):
    """x: (B, T, C); wq/wk/wv: (num_heads, C, head_size) in x @ W layout;
    w_proj: (C, C) in x @ W layout; b_proj: (C,)."""
    B, T, C = x.shape
    nh, _, hs = wq.shape
    assert nh * hs == C

    # Pack per-head weights so column block h of each C-wide section is head h
    # (matches the torch.cat ordering), then fuse Q|K|V along the output dim.
    def _flatten(w):                                            # (nh,C,hs)->(C,C)
        return jnp.transpose(w, (1, 0, 2)).reshape(C, nh * hs)

    wqkv = jnp.concatenate([_flatten(wq), _flatten(wk), _flatten(wv)], axis=-1)

    kernel = functools.partial(_mha_kernel, num_heads=nh, head_size=hs)
    return pl.pallas_call(
        kernel,
        out_shape=jax.ShapeDtypeStruct((B, T, C), x.dtype),
        grid=(B,),
        in_specs=[
            pl.BlockSpec((1, T, C), lambda b: (b, 0, 0)),
            pl.BlockSpec((C, 3 * C), lambda b: (0, 0)),
            pl.BlockSpec((C, C), lambda b: (0, 0)),
            pl.BlockSpec((1, C), lambda b: (0, 0)),
        ],
        out_specs=pl.BlockSpec((1, T, C), lambda b: (b, 0, 0)),
        compiler_params=pltpu.CompilerParams(
            dimension_semantics=("parallel",)),
    )(x, wqkv, w_proj, b_proj.reshape(1, C))


def _reference(x, wq, wk, wv, w_proj, b_proj):
    """Pure-JAX reference mirroring the PyTorch forward (eval mode)."""
    B, T, C = x.shape
    nh, _, hs = wq.shape
    outs = []
    scale = C ** -0.5
    mask = jnp.tril(jnp.ones((T, T), dtype=bool))
    for h in range(nh):
        q = x @ wq[h]
        k = x @ wk[h]
        v = x @ wv[h]
        wei = (q @ jnp.swapaxes(k, -2, -1)) * scale
        wei = jnp.where(mask, wei, -jnp.inf)
        wei = jax.nn.softmax(wei, axis=-1)
        outs.append(wei @ v)
    cat = jnp.concatenate(outs, axis=-1)
    return cat @ w_proj + b_proj


if __name__ == "__main__":
    # Shapes consistent with the module: n_embd=32, num_heads=4, head_size=8
    # (num_heads * head_size == n_embd), block_size=T=8, B=2.
    B, T, C = 2, 8, 32
    num_heads, head_size = 4, 8

    key = jax.random.PRNGKey(0)
    kx, kq, kk, kv, kp, kb = jax.random.split(key, 6)

    # Deterministic "PyTorch-style" init: U(-1/sqrt(fan_in), 1/sqrt(fan_in)).
    bound = 1.0 / (C ** 0.5)
    x = jax.random.normal(kx, (B, T, C), dtype=jnp.float32)
    # Stacked per-head weights in x @ W layout: (num_heads, C, head_size).
    wq = jax.random.uniform(kq, (num_heads, C, head_size), jnp.float32, -bound, bound)
    wk = jax.random.uniform(kk, (num_heads, C, head_size), jnp.float32, -bound, bound)
    wv = jax.random.uniform(kv, (num_heads, C, head_size), jnp.float32, -bound, bound)
    # Projection: PyTorch Linear(n_embd, n_embd) stored transposed for x @ W.
    w_proj = jax.random.uniform(kp, (C, C), jnp.float32, -bound, bound)
    b_proj = jax.random.uniform(kb, (C,), jnp.float32, -bound, bound)

    out = multi_head_attention(x, wq, wk, wv, w_proj, b_proj)
    out = jax.block_until_ready(out)

    ref = _reference(x, wq, wk, wv, w_proj, b_proj)
    assert out.shape == (B, T, C), out.shape
    # Tolerance slightly loosened for pl.reciprocal(approx=True) in softmax.
    assert jnp.allclose(out, ref, atol=2e-3, rtol=2e-3), (
        float(jnp.max(jnp.abs(out - ref))))

    print("KERNEL_OK")
</pallas_src>

<mosaic_0001>
module attributes {stable_mosaic.version = 11 : i64} {
  func.func @_mha_kernel(%arg0: i32, %arg1: memref<1x8x32xf32, #tpu.memory_space<vmem>>, %arg2: memref<32x96xf32, #tpu.memory_space<vmem>>, %arg3: memref<32x32xf32, #tpu.memory_space<vmem>>, %arg4: memref<1x32xf32, #tpu.memory_space<vmem>>, %arg5: memref<1x8x32xf32, #tpu.memory_space<vmem>>) attributes {dimension_semantics = [#tpu.dimension_semantics<parallel>], iteration_bounds = array<i64: 2>, scalar_prefetch = 0 : i64, scratch_operands = 0 : i64, tpu.core_type = #tpu.core_type<tc>, window_params = [{transform_indices = @transform_0, window_bounds = array<i64: 1, 8, 32>}, {pipeline_mode = #tpu.pipeline_mode<synchronous>, transform_indices = @transform_1, window_bounds = array<i64: 32, 96>}, {pipeline_mode = #tpu.pipeline_mode<synchronous>, transform_indices = @transform_2, window_bounds = array<i64: 32, 32>}, {pipeline_mode = #tpu.pipeline_mode<synchronous>, transform_indices = @transform_3, window_bounds = array<i64: 1, 32>}, {transform_indices = @transform_4, window_bounds = array<i64: 1, 8, 32>}]} {
    %c0 = arith.constant 0 : index
    %c0_0 = arith.constant 0 : index
    %c0_1 = arith.constant 0 : index
    %0 = vector.load %arg1[%c0, %c0_0, %c0_1] : memref<1x8x32xf32, #tpu.memory_space<vmem>>, vector<1x8x32xf32>
    %1 = vector.shape_cast %0 : vector<1x8x32xf32> to vector<8x32xf32>
    %c0_2 = arith.constant 0 : index
    %c0_3 = arith.constant 0 : index
    %2 = vector.load %arg2[%c0_2, %c0_3] : memref<32x96xf32, #tpu.memory_space<vmem>>, vector<32x96xf32>
    %cst = arith.constant dense<0.000000e+00> : vector<8x96xf32>
    %3 = tpu.matmul %1, %2, %cst {dimension_numbers = #tpu.dot_dimension_numbers<[1], [0], [0], [1], [0, 0, 1, 1], [], []>} : vector<8x32xf32>, vector<32x96xf32>, vector<8x96xf32> -> vector<8x96xf32>
    %cst_4 = arith.constant 3.200000e+01 : f32
    %cst_5 = arith.constant -5.000000e-01 : f32
    %4 = math.powf %cst_4, %cst_5 : f32
    %5 = tpu.iota {dimensions = array<i32: 0>} : vector<8x8xi32>
    %6 = tpu.iota {dimensions = array<i32: 1>} : vector<8x8xi32>
    %7 = arith.cmpi sle, %6, %5 : vector<8x8xi32>
    %8 = vector.extract_strided_slice %3 {offsets = [0, 0], sizes = [8, 8], strides = [1, 1]} : vector<8x96xf32> to vector<8x8xf32>
    %9 = vector.extract_strided_slice %3 {offsets = [0, 32], sizes = [8, 8], strides = [1, 1]} : vector<8x96xf32> to vector<8x8xf32>
    %10 = vector.extract_strided_slice %3 {offsets = [0, 64], sizes = [8, 8], strides = [1, 1]} : vector<8x96xf32> to vector<8x8xf32>
    %11 = tpu.transpose %9, [1, 0] : vector<8x8xf32> -> vector<8x8xf32>
    %cst_6 = arith.constant dense<0.000000e+00> : vector<8x8xf32>
    %12 = tpu.matmul %8, %11, %cst_6 {dimension_numbers = #tpu.dot_dimension_numbers<[1], [0], [0], [1], [0, 0, 1, 1], [], []>} : vector<8x8xf32>, vector<8x8xf32>, vector<8x8xf32> -> vector<8x8xf32>
    %13 = vector.broadcast %4 : f32 to vector<8x8xf32>
    %14 = arith.mulf %12, %13 : vector<8x8xf32>
    %cst_7 = arith.constant 0xFF800000 : f32
    %15 = vector.broadcast %cst_7 : f32 to vector<8x8xf32>
    %16 = arith.select %7, %14, %15 : vector<8x8xi1>, vector<8x8xf32>
    %cst_8 = arith.constant dense<0xFF800000> : vector<8xf32>
    %17 = vector.multi_reduction <maximumf>, %16, %cst_8 [1] : vector<8x8xf32> to vector<8xf32>
    %18 = vector.shape_cast %17 : vector<8xf32> to vector<8x1xf32>
    %19 = vector.broadcast %18 : vector<8x1xf32> to vector<8x8xf32>
    %20 = arith.subf %16, %19 : vector<8x8xf32>
    %21 = math.exp %20 : vector<8x8xf32>
    %cst_9 = arith.constant dense<0.000000e+00> : vector<8xf32>
    %22 = vector.multi_reduction <add>, %21, %cst_9 [1] : vector<8x8xf32> to vector<8xf32>
    %23 = vector.shape_cast %22 : vector<8xf32> to vector<8x1xf32>
    %24 = tpu.reciprocal %23 {approx = true} : vector<8x1xf32> -> vector<8x1xf32>
    %25 = vector.broadcast %24 : vector<8x1xf32> to vector<8x8xf32>
    %26 = arith.mulf %21, %25 : vector<8x8xf32>
    %cst_10 = arith.constant dense<0.000000e+00> : vector<8x8xf32>
    %27 = tpu.matmul %26, %10, %cst_10 {dimension_numbers = #tpu.dot_dimension_numbers<[1], [0], [0], [1], [0, 0, 1, 1], [], []>} : vector<8x8xf32>, vector<8x8xf32>, vector<8x8xf32> -> vector<8x8xf32>
    %28 = vector.extract_strided_slice %3 {offsets = [0, 8], sizes = [8, 8], strides = [1, 1]} : vector<8x96xf32> to vector<8x8xf32>
    %29 = vector.extract_strided_slice %3 {offsets = [0, 40], sizes = [8, 8], strides = [1, 1]} : vector<8x96xf32> to vector<8x8xf32>
    %30 = vector.extract_strided_slice %3 {offsets = [0, 72], sizes = [8, 8], strides = [1, 1]} : vector<8x96xf32> to vector<8x8xf32>
    %31 = tpu.transpose %29, [1, 0] : vector<8x8xf32> -> vector<8x8xf32>
    %cst_11 = arith.constant dense<0.000000e+00> : vector<8x8xf32>
    %32 = tpu.matmul %28, %31, %cst_11 {dimension_numbers = #tpu.dot_dimension_numbers<[1], [0], [0], [1], [0, 0, 1, 1], [], []>} : vector<8x8xf32>, vector<8x8xf32>, vector<8x8xf32> -> vector<8x8xf32>
    %33 = vector.broadcast %4 : f32 to vector<8x8xf32>
    %34 = arith.mulf %32, %33 : vector<8x8xf32>
    %cst_12 = arith.constant 0xFF800000 : f32
    %35 = vector.broadcast %cst_12 : f32 to vector<8x8xf32>
    %36 = arith.select %7, %34, %35 : vector<8x8xi1>, vector<8x8xf32>
    %cst_13 = arith.constant dense<0xFF800000> : vector<8xf32>
    %37 = vector.multi_reduction <maximumf>, %36, %cst_13 [1] : vector<8x8xf32> to vector<8xf32>
    %38 = vector.shape_cast %37 : vector<8xf32> to vector<8x1xf32>
    %39 = vector.broadcast %38 : vector<8x1xf32> to vector<8x8xf32>
    %40 = arith.subf %36, %39 : vector<8x8xf32>
    %41 = math.exp %40 : vector<8x8xf32>
    %cst_14 = arith.constant dense<0.000000e+00> : vector<8xf32>
    %42 = vector.multi_reduction <add>, %41, %cst_14 [1] : vector<8x8xf32> to vector<8xf32>
    %43 = vector.shape_cast %42 : vector<8xf32> to vector<8x1xf32>
    %44 = tpu.reciprocal %43 {approx = true} : vector<8x1xf32> -> vector<8x1xf32>
    %45 = vector.broadcast %44 : vector<8x1xf32> to vector<8x8xf32>
    %46 = arith.mulf %41, %45 : vector<8x8xf32>
    %cst_15 = arith.constant dense<0.000000e+00> : vector<8x8xf32>
    %47 = tpu.matmul %46, %30, %cst_15 {dimension_numbers = #tpu.dot_dimension_numbers<[1], [0], [0], [1], [0, 0, 1, 1], [], []>} : vector<8x8xf32>, vector<8x8xf32>, vector<8x8xf32> -> vector<8x8xf32>
    %48 = vector.extract_strided_slice %3 {offsets = [0, 16], sizes = [8, 8], strides = [1, 1]} : vector<8x96xf32> to vector<8x8xf32>
    %49 = vector.extract_strided_slice %3 {offsets = [0, 48], sizes = [8, 8], strides = [1, 1]} : vector<8x96xf32> to vector<8x8xf32>
    %50 = vector.extract_strided_slice %3 {offsets = [0, 80], sizes = [8, 8], strides = [1, 1]} : vector<8x96xf32> to vector<8x8xf32>
    %51 = tpu.transpose %49, [1, 0] : vector<8x8xf32> -> vector<8x8xf32>
    %cst_16 = arith.constant dense<0.000000e+00> : vector<8x8xf32>
    %52 = tpu.matmul %48, %51, %cst_16 {dimension_numbers = #tpu.dot_dimension_numbers<[1], [0], [0], [1], [0, 0, 1, 1], [], []>} : vector<8x8xf32>, vector<8x8xf32>, vector<8x8xf32> -> vector<8x8xf32>
    %53 = vector.broadcast %4 : f32 to vector<8x8xf32>
    %54 = arith.mulf %52, %53 : vector<8x8xf32>
    %cst_17 = arith.constant 0xFF800000 : f32
    %55 = vector.broadcast %cst_17 : f32 to vector<8x8xf32>
    %56 = arith.select %7, %54, %55 : vector<8x8xi1>, vector<8x8xf32>
    %cst_18 = arith.constant dense<0xFF800000> : vector<8xf32>
    %57 = vector.multi_reduction <maximumf>, %56, %cst_18 [1] : vector<8x8xf32> to vector<8xf32>
    %58 = vector.shape_cast %57 : vector<8xf32> to vector<8x1xf32>
    %59 = vector.broadcast %58 : vector<8x1xf32> to vector<8x8xf32>
    %60 = arith.subf %56, %59 : vector<8x8xf32>
    %61 = math.exp %60 : vector<8x8xf32>
    %cst_19 = arith.constant dense<0.000000e+00> : vector<8xf32>
    %62 = vector.multi_reduction <add>, %61, %cst_19 [1] : vector<8x8xf32> to vector<8xf32>
    %63 = vector.shape_cast %62 : vector<8xf32> to vector<8x1xf32>
    %64 = tpu.reciprocal %63 {approx = true} : vector<8x1xf32> -> vector<8x1xf32>
    %65 = vector.broadcast %64 : vector<8x1xf32> to vector<8x8xf32>
    %66 = arith.mulf %61, %65 : vector<8x8xf32>
    %cst_20 = arith.constant dense<0.000000e+00> : vector<8x8xf32>
    %67 = tpu.matmul %66, %50, %cst_20 {dimension_numbers = #tpu.dot_dimension_numbers<[1], [0], [0], [1], [0, 0, 1, 1], [], []>} : vector<8x8xf32>, vector<8x8xf32>, vector<8x8xf32> -> vector<8x8xf32>
    %68 = vector.extract_strided_slice %3 {offsets = [0, 24], sizes = [8, 8], strides = [1, 1]} : vector<8x96xf32> to vector<8x8xf32>
    %69 = vector.extract_strided_slice %3 {offsets = [0, 56], sizes = [8, 8], strides = [1, 1]} : vector<8x96xf32> to vector<8x8xf32>
    %70 = vector.extract_strided_slice %3 {offsets = [0, 88], sizes = [8, 8], strides = [1, 1]} : vector<8x96xf32> to vector<8x8xf32>
    %71 = tpu.transpose %69, [1, 0] : vector<8x8xf32> -> vector<8x8xf32>
    %cst_21 = arith.constant dense<0.000000e+00> : vector<8x8xf32>
    %72 = tpu.matmul %68, %71, %cst_21 {dimension_numbers = #tpu.dot_dimension_numbers<[1], [0], [0], [1], [0, 0, 1, 1], [], []>} : vector<8x8xf32>, vector<8x8xf32>, vector<8x8xf32> -> vector<8x8xf32>
    %73 = vector.broadcast %4 : f32 to vector<8x8xf32>
    %74 = arith.mulf %72, %73 : vector<8x8xf32>
    %cst_22 = arith.constant 0xFF800000 : f32
    %75 = vector.broadcast %cst_22 : f32 to vector<8x8xf32>
    %76 = arith.select %7, %74, %75 : vector<8x8xi1>, vector<8x8xf32>
    %cst_23 = arith.constant dense<0xFF800000> : vector<8xf32>
    %77 = vector.multi_reduction <maximumf>, %76, %cst_23 [1] : vector<8x8xf32> to vector<8xf32>
    %78 = vector.shape_cast %77 : vector<8xf32> to vector<8x1xf32>
    %79 = vector.broadcast %78 : vector<8x1xf32> to vector<8x8xf32>
    %80 = arith.subf %76, %79 : vector<8x8xf32>
    %81 = math.exp %80 : vector<8x8xf32>
    %cst_24 = arith.constant dense<0.000000e+00> : vector<8xf32>
    %82 = vector.multi_reduction <add>, %81, %cst_24 [1] : vector<8x8xf32> to vector<8xf32>
    %83 = vector.shape_cast %82 : vector<8xf32> to vector<8x1xf32>
    %84 = tpu.reciprocal %83 {approx = true} : vector<8x1xf32> -> vector<8x1xf32>
    %85 = vector.broadcast %84 : vector<8x1xf32> to vector<8x8xf32>
    %86 = arith.mulf %81, %85 : vector<8x8xf32>
    %cst_25 = arith.constant dense<0.000000e+00> : vector<8x8xf32>
    %87 = tpu.matmul %86, %70, %cst_25 {dimension_numbers = #tpu.dot_dimension_numbers<[1], [0], [0], [1], [0, 0, 1, 1], [], []>} : vector<8x8xf32>, vector<8x8xf32>, vector<8x8xf32> -> vector<8x8xf32>
    %88 = tpu.concatenate %27, %47, %67, %87 in 1 : vector<8x8xf32>, vector<8x8xf32>, vector<8x8xf32>, vector<8x8xf32> -> vector<8x32xf32>
    %c0_26 = arith.constant 0 : index
    %c0_27 = arith.constant 0 : index
    %89 = vector.load %arg3[%c0_26, %c0_27] : memref<32x32xf32, #tpu.memory_space<vmem>>, vector<32x32xf32>
    %cst_28 = arith.constant dense<0.000000e+00> : vector<8x32xf32>
    %90 = tpu.matmul %88, %89, %cst_28 {dimension_numbers = #tpu.dot_dimension_numbers<[1], [0], [0], [1], [0, 0, 1, 1], [], []>} : vector<8x32xf32>, vector<32x32xf32>, vector<8x32xf32> -> vector<8x32xf32>
    %c0_29 = arith.constant 0 : index
    %c0_30 = arith.constant 0 : index
    %91 = vector.load %arg4[%c0_29, %c0_30] : memref<1x32xf32, #tpu.memory_space<vmem>>, vector<1x32xf32>
    %92 = vector.broadcast %91 : vector<1x32xf32> to vector<8x32xf32>
    %93 = arith.addf %90, %92 : vector<8x32xf32>
    %c0_31 = arith.constant 0 : index
    %c0_32 = arith.constant 0 : index
    %c0_33 = arith.constant 0 : index
    %94 = vector.load %arg5[%c0_31, %c0_32, %c0_33] : memref<1x8x32xf32, #tpu.memory_space<vmem>>, vector<1x8x32xf32>
    %95 = vector.shape_cast %94 : vector<1x8x32xf32> to vector<8x32xf32>
    %96 = vector.shape_cast %93 : vector<8x32xf32> to vector<1x8x32xf32>
    tpu.vector_store %arg5[%c0_31, %c0_32, %c0_33], %96 {strides = array<i32>} : memref<1x8x32xf32, #tpu.memory_space<vmem>>, vector<1x8x32xf32>,
    return
  }
  func.func @transform_0(%arg0: i32) -> (i32, i32, i32) {
    %c0_i32 = arith.constant 0 : i32
    %c0_i32_0 = arith.constant 0 : i32
    %c0_i32_1 = arith.constant 0 : i32
    return %arg0, %c0_i32, %c0_i32_0 : i32, i32, i32
  }
  func.func @transform_1(%arg0: i32) -> (i32, i32) {
    %c0_i32 = arith.constant 0 : i32
    %c0_i32_0 = arith.constant 0 : i32
    %c0_i32_1 = arith.constant 0 : i32
    return %c0_i32, %c0_i32_0 : i32, i32
  }
  func.func @transform_2(%arg0: i32) -> (i32, i32) {
    %c0_i32 = arith.constant 0 : i32
    %c0_i32_0 = arith.constant 0 : i32
    %c0_i32_1 = arith.constant 0 : i32
    return %c0_i32, %c0_i32_0 : i32, i32
  }
  func.func @transform_3(%arg0: i32) -> (i32, i32) {
    %c0_i32 = arith.constant 0 : i32
    %c0_i32_0 = arith.constant 0 : i32
    %c0_i32_1 = arith.constant 0 : i32
    return %c0_i32, %c0_i32_0 : i32, i32
  }
  func.func @transform_4(%arg0: i32) -> (i32, i32, i32) {
    %c0_i32 = arith.constant 0 : i32
    %c0_i32_0 = arith.constant 0 : i32
    %c0_i32_1 = arith.constant 0 : i32
    return %arg0, %c0_i32, %c0_i32_0 : i32, i32, i32
  }
}

</mosaic_0001>

<llo_original>
// kernel: multi_head_attention.1
$region0: #{multi_head_attention.1}
  #allocation0 [shape = 'u32[]', space=smem, size = 0x4, offset = 0x4, fixed_abs, tag = 'smem constant byte address 0x4 - core index']
  #allocation1 [shape = 'u32[72,128]{1,0:T(1,128)}', space=vmem, size = 0x9000, scoped, tag = 'internal scratch']
  %s0 = inlined_call_operand.vmem [shape: f32[2,8,32], index: 0, kind: input, shape index: {}]
  %s1 = inlined_call_operand.vmem [shape: f32[32,96], index: 1, kind: input, shape index: {}]
  %s2 = inlined_call_operand.vmem [shape: f32[32,32], index: 2, kind: input, shape index: {}]
  %s3 = inlined_call_operand.vmem [shape: f32[1,32], index: 3, kind: input, shape index: {}]
  %s4 = inlined_call_operand.hbm [shape: f32[2,8,32], index: 4, kind: output, shape index: {}]
  %s5 = sld [smem:[#allocation0]]
  $region49: #{multi_head_attention.1} parent=0
    _
  %s7 = ssub.s32 1, %s5
  %s8 = scalar_select 0, %s7, %s5
  $region1: #{multi_head_attention.1} parent=0
    #allocation2 [shape = 'u8[8192]{0}', space=vmem, size = 0x2000, scoped, tag = 'output window, operand 0']
    #allocation3 [shape = 's32[2]{0}', space=sflag, size = 0x8, scoped, tag = 'scoped memory for multi_head_attention.1']
    %9 = vsyncpa [#allocation3], 0
    %s10 = scalar_lea.sflag [#allocation3], 1
    %11 = vsyncpa %s10, 0
    loop: start=0, step=1, limit=4
    $region2: #{multi_head_attention.1} parent=1 // loop_pre_header
      _
    $region3: #{multi_head_attention.1} parent=1 // loop_header
      %s13 = sphi 0, %s17
      %p14 = scmp.ge.s32.totalorder %s13, 4
      %s23 = sphi 0, %s25
      %s26 = sphi 0, %s23
      %s27 = sphi 0, %s26
      %s43 = sphi 0, %s27
      %s47 = sphi 0, %s47
      %s49 = sphi 0, %s47
      %s50 = sphi 0, %s49
      %s64 = sphi 0, %s50
      %s68 = sphi 0, %s68
      %s70 = sphi 0, %s68
      %s71 = sphi 0, %s70
      %s85 = sphi 0, %s71
      %s89 = sphi 0, %s89
      %s91 = sphi 0, %s89
      %s92 = sphi 0, %s91
      %s106 = sphi 0, %s92
      %s112 = sphi 0, %s114
      %s115 = sphi 0, %s112
      %s116 = sphi 0, %s115
      %s132 = sphi 0, %s116
    $region4: #{multi_head_attention.1} parent=1 // loop_header_branch
      %16 = sbr.rel (%p14) target = $region8
    $region5: #{multi_head_attention.1} parent=1 // loop_body
      %s18 = ssub.s32 %s13, 1
      %s19 = ssub.s32 %s13, 2
      %s20 = sadd.s32 %s13, 1
      %s21 = ssub.s32 %s13, %s20
      %p22 = scmp.eq.s32.totalorder %s21, 0
      %s24 = sadd.s32 %s23, 1
      %s25 = scalar_select %p22, %s23, %s24
      %p28 = pneg %p22
      %p29 = scmp.eq.s32.totalorder %s13, 1
      %p30 = por %p28, %p29
      %p31 = scmp.ne.s32.totalorder %s23, %s26
      %p32 = scmp.eq.s32.totalorder %s13, 0
      %p33 = por %p31, %p32
      %p34 = scmp.ne.s32.totalorder %s23, %s26
      %p35 = scmp.eq.s32.totalorder %s18, 1
      %p36 = por %p34, %p35
      %p37 = scmp.ne.s32.totalorder %s26, %s27
      %p38 = scmp.eq.s32.totalorder %s18, 0
      %p39 = por %p37, %p38
      %p40 = scmp.ne.s32.totalorder %s26, %s27
      %p41 = scmp.eq.s32.totalorder %s19, 1
      %p42 = por %p40, %p41
      %p44 = scmp.ne.s32.totalorder %s27, %s43
      %p45 = scmp.eq.s32.totalorder %s19, 0
      %p46 = por %p44, %p45
      %s48 = sadd.s32 %s47, 1
      %p51 = scmp.eq.s32.totalorder %s13, 1
      %p52 = scmp.ne.s32.totalorder %s47, %s49
      %p53 = scmp.eq.s32.totalorder %s13, 0
      %p54 = por %p52, %p53
      %p55 = scmp.ne.s32.totalorder %s47, %s49
      %p56 = scmp.eq.s32.totalorder %s18, 1
      %p57 = por %p55, %p56
      %p58 = scmp.ne.s32.totalorder %s49, %s50
      %p59 = scmp.eq.s32.totalorder %s18, 0
      %p60 = por %p58, %p59
      %p61 = scmp.ne.s32.totalorder %s49, %s50
      %p62 = scmp.eq.s32.totalorder %s19, 1
      %p63 = por %p61, %p62
      %p65 = scmp.ne.s32.totalorder %s50, %s64
      %p66 = scmp.eq.s32.totalorder %s19, 0
      %p67 = por %p65, %p66
      %s69 = sadd.s32 %s68, 1
      %p72 = scmp.eq.s32.totalorder %s13, 1
      %p73 = scmp.ne.s32.totalorder %s68, %s70
      %p74 = scmp.eq.s32.totalorder %s13, 0
      %p75 = por %p73, %p74
      %p76 = scmp.ne.s32.totalorder %s68, %s70
      %p77 = scmp.eq.s32.totalorder %s18, 1
      %p78 = por %p76, %p77
      %p79 = scmp.ne.s32.totalorder %s70, %s71
      %p80 = scmp.eq.s32.totalorder %s18, 0
      %p81 = por %p79, %p80
      %p82 = scmp.ne.s32.totalorder %s70, %s71
      %p83 = scmp.eq.s32.totalorder %s19, 1
      %p84 = por %p82, %p83
      %p86 = scmp.ne.s32.totalorder %s71, %s85
      %p87 = scmp.eq.s32.totalorder %s19, 0
      %p88 = por %p86, %p87
      %s90 = sadd.s32 %s89, 1
      %p93 = scmp.eq.s32.totalorder %s13, 1
      %p94 = scmp.ne.s32.totalorder %s89, %s91
      %p95 = scmp.eq.s32.totalorder %s13, 0
      %p96 = por %p94, %p95
      %p97 = scmp.ne.s32.totalorder %s89, %s91
      %p98 = scmp.eq.s32.totalorder %s18, 1
      %p99 = por %p97, %p98
      %p100 = scmp.ne.s32.totalorder %s91, %s92
      %p101 = scmp.eq.s32.totalorder %s18, 0
      %p102 = por %p100, %p101
      %p103 = scmp.ne.s32.totalorder %s91, %s92
      %p104 = scmp.eq.s32.totalorder %s19, 1
      %p105 = por %p103, %p104
      %p107 = scmp.ne.s32.totalorder %s92, %s106
      %p108 = scmp.eq.s32.totalorder %s19, 0
      %p109 = por %p107, %p108
      %s110 = ssub.s32 %s13, %s20
      %p111 = scmp.eq.s32.totalorder %s110, 0
      %s113 = sadd.s32 %s112, 1
      %s114 = scalar_select %p111, %s112, %s113
      %p117 = pneg %p111
      %p118 = scmp.eq.s32.totalorder %s13, 1
      %p119 = por %p117, %p118
      %p120 = scmp.ne.s32.totalorder %s112, %s115
      %p121 = scmp.eq.s32.totalorder %s13, 0
      %p122 = por %p120, %p121
      %p123 = scmp.ne.s32.totalorder %s112, %s115
      %p124 = scmp.eq.s32.totalorder %s18, 1
      %p125 = por %p123, %p124
      %p126 = scmp.ne.s32.totalorder %s115, %s116
      %p127 = scmp.eq.s32.totalorder %s18, 0
      %p128 = por %p126, %p127
      %p129 = scmp.ne.s32.totalorder %s115, %s116
      %p130 = scmp.eq.s32.totalorder %s19, 1
      %p131 = por %p129, %p130
      %p133 = scmp.ne.s32.totalorder %s116, %s132
      %p134 = scmp.eq.s32.totalorder %s19, 0
      %p135 = por %p133, %p134
      %p136 = scmp.le.s32.totalorder 1, %s13
      %p137 = scmp.lt.s32.totalorder %s13, 3
      %p138 = pnand %p136, %p137
      %p139 = pneg %p138
      // Predicated region
      $region9: #{multi_head_attention.1} parent=5 // pred_check
        _
      $region10: #{multi_head_attention.1} parent=5 // pred_check_branch
        %141 = sbr.rel (%p138) target = $region12
      $region11: #{multi_head_attention.1} parent=5 // pred_region
        %s142 = ssub.s32 %s13, 1
        // Predicated region
        $region13: #{multi_head_attention.1} parent=11 // pred_check
          %p143 = pneg %p60
        $region14: #{multi_head_attention.1} parent=11 // pred_check_branch
          %145 = sbr.rel (%p143) target = $region16
        $region15: #{multi_head_attention.1} parent=11 // pred_region
          _
        $region16: #{multi_head_attention.1} parent=11 // pred_fallthru
          _
        // Predicated region
        $region17: #{multi_head_attention.1} parent=11 // pred_check
          %p146 = pneg %p81
        $region18: #{multi_head_attention.1} parent=11 // pred_check_branch
          %148 = sbr.rel (%p146) target = $region20
        $region19: #{multi_head_attention.1} parent=11 // pred_region
          _
        $region20: #{multi_head_attention.1} parent=11 // pred_fallthru
          _
        // Predicated region
        $region21: #{multi_head_attention.1} parent=11 // pred_check
          %p149 = pneg %p102
        $region22: #{multi_head_attention.1} parent=11 // pred_check_branch
          %151 = sbr.rel (%p149) target = $region24
        $region23: #{multi_head_attention.1} parent=11 // pred_region
          _
        $region24: #{multi_head_attention.1} parent=11 // pred_fallthru
          _
      $region12: #{multi_head_attention.1} parent=5 // pred_fallthru
        _
      %p152 = scmp.lt.s32.totalorder %s13, 2
      // Predicated region
      $region25: #{multi_head_attention.1} parent=5 // pred_check
        %p153 = pneg %p152
      $region26: #{multi_head_attention.1} parent=5 // pred_check_branch
        %155 = sbr.rel (%p153) target = $region28
      $region27: #{multi_head_attention.1} parent=5 // pred_region
        // Predicated region
        $region29: #{multi_head_attention.1} parent=27 // pred_check
          %p156 = pneg %p33
        $region30: #{multi_head_attention.1} parent=27 // pred_check_branch
          %158 = sbr.rel (%p156) target = $region32
        $region31: #{multi_head_attention.1} parent=27 // pred_region
          %p159 = scmp.lt.s32.totalorder %s13, 1
          %s160 = scalar_select %p159, %s13, 1
          %s161 = smul.addr %s160, 8
          %s162 = scalar_lea.vmem %s0, %s161
        $region32: #{multi_head_attention.1} parent=27 // pred_fallthru
          _
      $region28: #{multi_head_attention.1} parent=5 // pred_fallthru
        _
      %p163 = scmp.le.s32.totalorder 1, %s13
      %p164 = scmp.lt.s32.totalorder %s13, 3
      %p165 = pnand %p163, %p164
      %p166 = pneg %p165
      // Predicated region
      $region33: #{multi_head_attention.1} parent=5 // pred_check
        _
      $region34: #{multi_head_attention.1} parent=5 // pred_check_branch
        %168 = sbr.rel (%p165) target = $region36
      $region35: #{multi_head_attention.1} parent=5 // pred_region
        %s169 = ssub.s32 %s13, 1
        %p170 = scmp.lt.s32.totalorder %s18, 1
        %s171 = scalar_select %p170, %s18, 1
        %s172 = smul.addr %s171, 8
        %s173 = scalar_lea.vmem %s0, %s172
        %p174 = pneg %p39
        %p175 = pneg %p36
        %p176 = pneg %p60
        %p177 = pneg %p57
        %p178 = pneg %p81
        %p179 = pneg %p78
        %p180 = pneg %p102
        %p181 = pneg %p99
        %p182 = pneg %p128
        %p183 = pneg %p125
        %s184 = sand.u32 %s115, 1
        %s185 = scalar_lea.sflag [#allocation3], %s184
        %s186 = sand.u32 %s115, 1
        %s187 = smul.addr %s186, 8
        %s188 = scalar_lea.vmem [#allocation2], %s187
        %p189 = scmp.lt.s32.totalorder %s18, 1
        %s190 = scalar_select %p189, %s18, 1
        %s191 = smul.addr %s190, 8
        %s192 = scalar_lea.vmem %s0, %s191
        %v193 = vld [vmem:[%s192] sm:$0xff]
        %v194 = vld [vmem:[%s1] sm:$0xff]
        %v195 = vld [vmem:[%s1 + $0x8] sm:$0xff]
        %v196 = vld [vmem:[%s1 + $0x10] sm:$0xff]
        %v197 = vld [vmem:[%s1 + $0x18] sm:$0xff]
        %vm198 = vcmask 261120
        %v200 = vsel %vm198, %v193, 0
        %202 = vmatpush.msra.mxu0 0.0
        %203 = vmatpush.msra.mxu0 0.0
        %204 = vmatpush.msra.mxu0 0.0
        %205 = vmatpush.msra.mxu0 0.0
        %206 = vmatpush.msra.mxu0 0.0
        %207 = vmatpush.msra.mxu0 0.0
        %208 = vmatpush.msra.mxu0 0.0
        %209 = vmatpush.msra.mxu0 0.0
        %210 = vmatpush.msra.mxu0 0.0
        %211 = vmatpush.msra.mxu0 0.0
        %212 = vmatpush.msra.mxu0 0.0
        %213 = vmatpush.msra.mxu0 0.0
        %214 = vmatpush.msra.mxu0 %v197
        %215 = vmatpush.msra.mxu0 %v196
        %216 = vmatpush.msra.mxu0 %v195
        %217 = vmatpush.msra.mxu0 %v194
        %218 = vmatmul.f32.gmra.mxu0 %v200
        %v219 = vpop.f32.mrf.mxu0
        %v220 = vadd.f32 0.0, %v219
        %221 = vdwg.mxu0
        %v222 = vlaneseq
        %v223 = vshrl.u32 %v222, 7
        %v224 = vlaneseq
        %v225 = vand.u32 %v224, 127
        %vm226 = vcmp.le.s32.totalorder %v225, %v223
        %228 = vrot.lane.b32.xlu0 %v220, 96
        %v229 = vpop.permute.xlu0 %228
        %vm230 = vcmask 64512
        %v231 = vsel %vm230, %v220, 0
        %v233 = vsel %vm230, %v229, 0
        %235 = vmatpush.xpose.msra.mxu0 0.0
        %236 = vmatpush.xpose.msra.mxu0 0.0
        %237 = vmatpush.xpose.msra.mxu0 0.0
        %238 = vmatpush.xpose.msra.mxu0 0.0
        %239 = vmatpush.xpose.msra.mxu0 0.0
        %240 = vmatpush.xpose.msra.mxu0 0.0
        %241 = vmatpush.xpose.msra.mxu0 0.0
        %242 = vmatpush.xpose.msra.mxu0 0.0
        %243 = vmatpush.xpose.msra.mxu0 0.0
        %244 = vmatpush.xpose.msra.mxu0 0.0
        %245 = vmatpush.xpose.msra.mxu0 0.0
        %246 = vmatpush.xpose.msra.mxu0 0.0
        %247 = vmatpush.xpose.msra.mxu0 0.0
        %248 = vmatpush.xpose.msra.mxu0 0.0
        %249 = vmatpush.xpose.msra.mxu0 0.0
        %250 = vmatpush.xpose.msra.mxu0 %v233
        %251 = vmatmul.f32.gmra.mxu0 %v231
        %v252 = vpop.f32.mrf.mxu0
        %v253 = vadd.f32 0.0, %v252
        %254 = vdwg.mxu0
        %v255 = vmul.f32 %v253, 0.17677669
        %v256 = vsel %vm226, %v255, -inf
        %v257 = vsel %vm230, %v256, -inf
        %258 = vmax.xlane.f32.xlu0 %v257
        %v259 = vpop.xlane.xlu0 %258
        %v260 = vsub.f32 %v256, %v259
        %v261 = vmul.f32 %v260, 1.442695
        %v262 = vpow.pop %v261
        %v263 = vsel %vm230, %v262, 0.0
        %264 = vadd.xlane.f32.xlu0 %v263
        %v265 = vpop.xlane.xlu0 %264
        %v266 = vrcp.pop %v265
        %v267 = vmul.f32 %v262, %v266
        %268 = vrot.lane.b32.xlu0 %v220, 64
        %v269 = vpop.permute.xlu0 %268
        %v272 = vsel %vm230, %v267, 0
        %274 = vmatpush.msra.mxu0 0.0
        %275 = vmatpush.msra.mxu0 0.0
        %276 = vmatpush.msra.mxu0 0.0
        %277 = vmatpush.msra.mxu0 0.0
        %278 = vmatpush.msra.mxu0 0.0
        %279 = vmatpush.msra.mxu0 0.0
        %280 = vmatpush.msra.mxu0 0.0
        %281 = vmatpush.msra.mxu0 0.0
        %282 = vmatpush.msra.mxu0 0.0
        %283 = vmatpush.msra.mxu0 0.0
        %284 = vmatpush.msra.mxu0 0.0
        %285 = vmatpush.msra.mxu0 0.0
        %286 = vmatpush.msra.mxu0 0.0
        %287 = vmatpush.msra.mxu0 0.0
        %288 = vmatpush.msra.mxu0 0.0
        %289 = vmatpush.msra.mxu0 %v269
        %290 = vmatmul.f32.gmra.mxu0 %v272
        %v291 = vpop.f32.mrf.mxu0
        %v292 = vadd.f32 0.0, %v291
        %293 = vdwg.mxu0
        %294 = vrot.lane.b32.xlu0 %v220, 120
        %v295 = vpop.permute.xlu0 %294
        %296 = vrot.lane.b32.xlu0 %v220, 88
        %v297 = vpop.permute.xlu0 %296
        %v298 = vsel %vm230, %v295, 0
        %v300 = vsel %vm230, %v297, 0
        %302 = vmatpush.xpose.msra.mxu0 0.0
        %303 = vmatpush.xpose.msra.mxu0 0.0
        %304 = vmatpush.xpose.msra.mxu0 0.0
        %305 = vmatpush.xpose.msra.mxu0 0.0
        %306 = vmatpush.xpose.msra.mxu0 0.0
        %307 = vmatpush.xpose.msra.mxu0 0.0
        %308 = vmatpush.xpose.msra.mxu0 0.0
        %309 = vmatpush.xpose.msra.mxu0 0.0
        %310 = vmatpush.xpose.msra.mxu0 0.0
        %311 = vmatpush.xpose.msra.mxu0 0.0
        %312 = vmatpush.xpose.msra.mxu0 0.0
        %313 = vmatpush.xpose.msra.mxu0 0.0
        %314 = vmatpush.xpose.msra.mxu0 0.0
        %315 = vmatpush.xpose.msra.mxu0 0.0
        %316 = vmatpush.xpose.msra.mxu0 0.0
        %317 = vmatpush.xpose.msra.mxu0 %v300
        %318 = vmatmul.f32.gmra.mxu0 %v298
        %v319 = vpop.f32.mrf.mxu0
        %v320 = vadd.f32 0.0, %v319
        %321 = vdwg.mxu0
        %v322 = vmul.f32 %v320, 0.17677669
        %v323 = vsel %vm226, %v322, -inf
        %v324 = vsel %vm230, %v323, -inf
        %325 = vmax.xlane.f32.xlu0 %v324
        %v326 = vpop.xlane.xlu0 %325
        %v327 = vsub.f32 %v323, %v326
        %v328 = vmul.f32 %v327, 1.442695
        %v329 = vpow.pop %v328
        %v330 = vsel %vm230, %v329, 0.0
        %331 = vadd.xlane.f32.xlu0 %v330
        %v332 = vpop.xlane.xlu0 %331
        %v333 = vrcp.pop %v332
        %v334 = vmul.f32 %v329, %v333
        %335 = vrot.lane.b32.xlu0 %v220, 56
        %v336 = vpop.permute.xlu0 %335
        %v339 = vsel %vm230, %v334, 0
        %341 = vmatpush.msra.mxu0 0.0
        %342 = vmatpush.msra.mxu0 0.0
        %343 = vmatpush.msra.mxu0 0.0
        %344 = vmatpush.msra.mxu0 0.0
        %345 = vmatpush.msra.mxu0 0.0
        %346 = vmatpush.msra.mxu0 0.0
        %347 = vmatpush.msra.mxu0 0.0
        %348 = vmatpush.msra.mxu0 0.0
        %349 = vmatpush.msra.mxu0 0.0
        %350 = vmatpush.msra.mxu0 0.0
        %351 = vmatpush.msra.mxu0 0.0
        %352 = vmatpush.msra.mxu0 0.0
        %353 = vmatpush.msra.mxu0 0.0
        %354 = vmatpush.msra.mxu0 0.0
        %355 = vmatpush.msra.mxu0 0.0
        %356 = vmatpush.msra.mxu0 %v336
        %357 = vmatmul.f32.gmra.mxu0 %v339
        %v358 = vpop.f32.mrf.mxu0
        %v359 = vadd.f32 0.0, %v358
        %360 = vdwg.mxu0
        %361 = vrot.lane.b32.xlu0 %v220, 112
        %v362 = vpop.permute.xlu0 %361
        %363 = vrot.lane.b32.xlu0 %v220, 80
        %v364 = vpop.permute.xlu0 %363
        %v365 = vsel %vm230, %v362, 0
        %v367 = vsel %vm230, %v364, 0
        %369 = vmatpush.xpose.msra.mxu0 0.0
        %370 = vmatpush.xpose.msra.mxu0 0.0
        %371 = vmatpush.xpose.msra.mxu0 0.0
        %372 = vmatpush.xpose.msra.mxu0 0.0
        %373 = vmatpush.xpose.msra.mxu0 0.0
        %374 = vmatpush.xpose.msra.mxu0 0.0
        %375 = vmatpush.xpose.msra.mxu0 0.0
        %376 = vmatpush.xpose.msra.mxu0 0.0
        %377 = vmatpush.xpose.msra.mxu0 0.0
        %378 = vmatpush.xpose.msra.mxu0 0.0
        %379 = vmatpush.xpose.msra.mxu0 0.0
        %380 = vmatpush.xpose.msra.mxu0 0.0
        %381 = vmatpush.xpose.msra.mxu0 0.0
        %382 = vmatpush.xpose.msra.mxu0 0.0
        %383 = vmatpush.xpose.msra.mxu0 0.0
        %384 = vmatpush.xpose.msra.mxu0 %v367
        %385 = vmatmul.f32.gmra.mxu0 %v365
        %v386 = vpop.f32.mrf.mxu0
        %v387 = vadd.f32 0.0, %v386
        %388 = vdwg.mxu0
        %v389 = vmul.f32 %v387, 0.17677669
        %v390 = vsel %vm226, %v389, -inf
        %v391 = vsel %vm230, %v390, -inf
        %392 = vmax.xlane.f32.xlu0 %v391
        %v393 = vpop.xlane.xlu0 %392
        %v394 = vsub.f32 %v390, %v393
        %v395 = vmul.f32 %v394, 1.442695
        %v396 = vpow.pop %v395
        %v397 = vsel %vm230, %v396, 0.0
        %398 = vadd.xlane.f32.xlu0 %v397
        %v399 = vpop.xlane.xlu0 %398
        %v400 = vrcp.pop %v399
        %v401 = vmul.f32 %v396, %v400
        %402 = vrot.lane.b32.xlu0 %v220, 48
        %v403 = vpop.permute.xlu0 %402
        %v406 = vsel %vm230, %v401, 0
        %408 = vmatpush.msra.mxu0 0.0
        %409 = vmatpush.msra.mxu0 0.0
        %410 = vmatpush.msra.mxu0 0.0
        %411 = vmatpush.msra.mxu0 0.0
        %412 = vmatpush.msra.mxu0 0.0
        %413 = vmatpush.msra.mxu0 0.0
        %414 = vmatpush.msra.mxu0 0.0
        %415 = vmatpush.msra.mxu0 0.0
        %416 = vmatpush.msra.mxu0 0.0
        %417 = vmatpush.msra.mxu0 0.0
        %418 = vmatpush.msra.mxu0 0.0
        %419 = vmatpush.msra.mxu0 0.0
        %420 = vmatpush.msra.mxu0 0.0
        %421 = vmatpush.msra.mxu0 0.0
        %422 = vmatpush.msra.mxu0 0.0
        %423 = vmatpush.msra.mxu0 %v403
        %424 = vmatmul.f32.gmra.mxu0 %v406
        %v425 = vpop.f32.mrf.mxu0
        %v426 = vadd.f32 0.0, %v425
        %427 = vdwg.mxu0
        %428 = vrot.lane.b32.xlu0 %v220, 104
        %v429 = vpop.permute.xlu0 %428
        %430 = vrot.lane.b32.xlu0 %v220, 72
        %v431 = vpop.permute.xlu0 %430
        %v432 = vsel %vm230, %v429, 0
        %v434 = vsel %vm230, %v431, 0
        %436 = vmatpush.xpose.msra.mxu0 0.0
        %437 = vmatpush.xpose.msra.mxu0 0.0
        %438 = vmatpush.xpose.msra.mxu0 0.0
        %439 = vmatpush.xpose.msra.mxu0 0.0
        %440 = vmatpush.xpose.msra.mxu0 0.0
        %441 = vmatpush.xpose.msra.mxu0 0.0
        %442 = vmatpush.xpose.msra.mxu0 0.0
        %443 = vmatpush.xpose.msra.mxu0 0.0
        %444 = vmatpush.xpose.msra.mxu0 0.0
        %445 = vmatpush.xpose.msra.mxu0 0.0
        %446 = vmatpush.xpose.msra.mxu0 0.0
        %447 = vmatpush.xpose.msra.mxu0 0.0
        %448 = vmatpush.xpose.msra.mxu0 0.0
        %449 = vmatpush.xpose.msra.mxu0 0.0
        %450 = vmatpush.xpose.msra.mxu0 0.0
        %451 = vmatpush.xpose.msra.mxu0 %v434
        %452 = vmatmul.f32.gmra.mxu0 %v432
        %v453 = vpop.f32.mrf.mxu0
        %v454 = vadd.f32 0.0, %v453
        %455 = vdwg.mxu0
        %v456 = vmul.f32 %v454, 0.17677669
        %v457 = vsel %vm226, %v456, -inf
        %v458 = vsel %vm230, %v457, -inf
        %459 = vmax.xlane.f32.xlu0 %v458
        %v460 = vpop.xlane.xlu0 %459
        %v461 = vsub.f32 %v457, %v460
        %v462 = vmul.f32 %v461, 1.442695
        %v463 = vpow.pop %v462
        %v464 = vsel %vm230, %v463, 0.0
        %465 = vadd.xlane.f32.xlu0 %v464
        %v466 = vpop.xlane.xlu0 %465
        %v467 = vrcp.pop %v466
        %v468 = vmul.f32 %v463, %v467
        %469 = vrot.lane.b32.xlu0 %v220, 40
        %v470 = vpop.permute.xlu0 %469
        %v473 = vsel %vm230, %v468, 0
        %475 = vmatpush.msra.mxu0 0.0
        %476 = vmatpush.msra.mxu0 0.0
        %477 = vmatpush.msra.mxu0 0.0
        %478 = vmatpush.msra.mxu0 0.0
        %479 = vmatpush.msra.mxu0 0.0
        %480 = vmatpush.msra.mxu0 0.0
        %481 = vmatpush.msra.mxu0 0.0
        %482 = vmatpush.msra.mxu0 0.0
        %483 = vmatpush.msra.mxu0 0.0
        %484 = vmatpush.msra.mxu0 0.0
        %485 = vmatpush.msra.mxu0 0.0
        %486 = vmatpush.msra.mxu0 0.0
        %487 = vmatpush.msra.mxu0 0.0
        %488 = vmatpush.msra.mxu0 0.0
        %489 = vmatpush.msra.mxu0 0.0
        %490 = vmatpush.msra.mxu0 %v470
        %491 = vmatmul.f32.gmra.mxu0 %v473
        %v492 = vpop.f32.mrf.mxu0
        %v493 = vadd.f32 0.0, %v492
        %494 = vdwg.mxu0
        %496 = vrot.lane.b32.xlu0 %v359, 8
        %v497 = vpop.permute.xlu0 %496
        %500 = vrot.lane.b32.xlu0 %v426, 16
        %v501 = vpop.permute.xlu0 %500
        %504 = vrot.lane.b32.xlu0 %v493, 24
        %v505 = vpop.permute.xlu0 %504
        %v507 = vsel %vm230, %v292, %v497
        %vm508 = vcmask 130048
        %v509 = vsel %vm508, %v507, %v501
        %vm510 = vcmask 195584
        %v511 = vsel %vm510, %v509, %v505
        %v512 = vld [vmem:[%s2] sm:$0xff]
        %v513 = vld [vmem:[%s2 + $0x8] sm:$0xff]
        %v514 = vld [vmem:[%s2 + $0x10] sm:$0xff]
        %v515 = vld [vmem:[%s2 + $0x18] sm:$0xff]
        %v516 = vld [vmem:[%s3] sm:$0x1]
        %v518 = vperm.slane %v516, 0
        %v521 = vsel %vm198, %v511, 0
        %523 = vmatpush.msra.mxu0 0.0
        %524 = vmatpush.msra.mxu0 0.0
        %525 = vmatpush.msra.mxu0 0.0
        %526 = vmatpush.msra.mxu0 0.0
        %527 = vmatpush.msra.mxu0 0.0
        %528 = vmatpush.msra.mxu0 0.0
        %529 = vmatpush.msra.mxu0 0.0
        %530 = vmatpush.msra.mxu0 0.0
        %531 = vmatpush.msra.mxu0 0.0
        %532 = vmatpush.msra.mxu0 0.0
        %533 = vmatpush.msra.mxu0 0.0
        %534 = vmatpush.msra.mxu0 0.0
        %535 = vmatpush.msra.mxu0 %v515
        %536 = vmatpush.msra.mxu0 %v514
        %537 = vmatpush.msra.mxu0 %v513
        %538 = vmatpush.msra.mxu0 %v512
        %539 = vmatmul.f32.gmra.mxu0 %v521
        %v540 = vpop.f32.mrf.mxu0
        %v541 = vadd.f32 %v518, %v540
        %542 = vdwg.mxu0
        %543 = vst.msk [vmem:[%s188] sm:$0xff] %vm198, %v541
        %s544 = sand.u32 %s115, 1
        %s545 = scalar_lea.sflag [#allocation3], %s544
        %s546 = sand.u32 %s115, 1
        %s547 = smul.addr %s546, 8
        %s548 = scalar_lea.vmem [#allocation2], %s547
        // Predicated region
        $region37: #{multi_head_attention.1} parent=35 // pred_check
          %p549 = pneg %p125
        $region38: #{multi_head_attention.1} parent=35 // pred_check_branch
          %551 = sbr.rel (%p549) target = $region40
        $region39: #{multi_head_attention.1} parent=35 // pred_region
          %553 = vsyncadd %s545, 0
          %s554 = smul.addr %s18, 8
          %s555 = scalar_lea.hbm %s4, %s554
          %s557 = sshll.u32 %s548, 4
          %s558 = int_to_ptr.vmem [resolvable:$true] %s557
          %s559 = sshll.u32 %s555, 4
          %s560 = int_to_ptr.hbm [resolvable:$true] %s559
          %562 = dma.vmem_to_hbm [thread:$0]  %s558, 128, %s560, %s545
        $region40: #{multi_head_attention.1} parent=35 // pred_fallthru
          _
      $region36: #{multi_head_attention.1} parent=5 // pred_fallthru
        _
      %p563 = scmp.le.s32.totalorder 2, %s13
      // Predicated region
      $region41: #{multi_head_attention.1} parent=5 // pred_check
        %p564 = pneg %p563
      $region42: #{multi_head_attention.1} parent=5 // pred_check_branch
        %566 = sbr.rel (%p564) target = $region44
      $region43: #{multi_head_attention.1} parent=5 // pred_region
        %s567 = ssub.s32 %s13, 2
        // Predicated region
        $region45: #{multi_head_attention.1} parent=43 // pred_check
          %p568 = pneg %p131
        $region46: #{multi_head_attention.1} parent=43 // pred_check_branch
          %570 = sbr.rel (%p568) target = $region48
        $region47: #{multi_head_attention.1} parent=43 // pred_region
          %s571 = sand.u32 %s116, 1
          %s572 = scalar_lea.sflag [#allocation3], %s571
          %s573 = sand.u32 %s116, 1
          %s574 = smul.addr %s573, 8
          %s575 = scalar_lea.vmem [#allocation2], %s574
          %577 = dma.done %s572, 128
        $region48: #{multi_head_attention.1} parent=43 // pred_fallthru
          _
      $region44: #{multi_head_attention.1} parent=5 // pred_fallthru
        _
    $region6: #{multi_head_attention.1} parent=1 // loop_footer
      %s17 = sadd.s32 1, %s13
    $region7: #{multi_head_attention.1} parent=1 // loop_footer_branch
      %12 = sbr.rel target = $region3
    $region8: #{multi_head_attention.1} parent=1 // loop_exit
      _
    %578 = vsyncpa [#allocation3], 1
    %s579 = scalar_lea.sflag [#allocation3], 1
    %580 = vsyncpa %s579, 1

</llo_original>
